<compile_context>
chip_gen: v6e
topology: v6e:2x2x1
jax: 0.10.0
libtpu: 0.0.40
codegen_flags: <defaults>
</compile_context>

<pallas_src>
import jax
import jax.numpy as jnp
from jax.experimental import pallas as pl
from jax.experimental.pallas import tpu as pltpu


def _elu(x):
    # ELU(alpha=1): x if x > 0 else exp(x) - 1 (clamp arg so exp never overflows)
    return jnp.where(x > 0, x, jnp.exp(jnp.minimum(x, 0.0)) - 1.0)


def _dense_vpu(h, w, b):
    """Feature-major dense layer, unrolled on the VPU (no MXU).

    h: [n_in, tb]   activations, batch on the lane axis
    w: [n_out, n_in]  (PyTorch nn.Linear weight layout, used as-is)
    b: [n_out, 1]
    returns [n_out, tb] in f32
    """
    n_out, n_in = w.shape
    tb = h.shape[1]
    acc = jnp.broadcast_to(b, (n_out, tb))
    for i in range(n_in):  # unrolled: <= 8 broadcast multiply-adds per layer
        acc = acc + w[:, i:i + 1] * h[i:i + 1, :]
    return acc


def mlp_kernel(x_ref, w1_ref, b1_ref, w2_ref, b2_ref, w3_ref, b3_ref, o_ref):
    x = x_ref[...]                                        # [F_in, tb] f32
    h = _elu(_dense_vpu(x, w1_ref[...], b1_ref[...]))     # [8, tb]
    h = _elu(_dense_vpu(h, w2_ref[...], b2_ref[...]))     # [8, tb]
    o_ref[...] = _dense_vpu(h, w3_ref[...], b3_ref[...]).astype(o_ref.dtype)


def mlp_forward(x, params, *, tb=64 * 1024):
    """x: [B, 6] float32. params: PyTorch-layout weights [out, in], biases [out, 1]."""
    B, F_in = x.shape
    w1, b1 = params["w1"], params["b1"]   # (8, 6), (8, 1)
    w2, b2 = params["w2"], params["b2"]   # (8, 8), (8, 1)
    w3, b3 = params["w3"], params["b3"]   # (1, 8), (1, 1)
    F_out = w3.shape[0]

    # Lane-aligned batch tile, clamped for small batches; ragged B is padded.
    lane = 128
    b_ceil = pl.cdiv(B, lane) * lane
    tb = max(lane, (min(tb, b_ceil) // lane) * lane)
    B_pad = pl.cdiv(B, tb) * tb
    grid = (B_pad // tb,)

    # Feature-major layout: batch rides the 128-wide lane axis.
    x_t = jnp.transpose(x)                                # [F_in, B]
    if B_pad != B:
        x_t = jnp.pad(x_t, ((0, 0), (0, B_pad - B)))      # pad cols -> sliced off later

    rep = lambda a: pl.BlockSpec(a.shape, lambda i: (0, 0))  # resident replicated block

    out_t = pl.pallas_call(
        mlp_kernel,
        out_shape=jax.ShapeDtypeStruct((F_out, B_pad), x.dtype),
        grid=grid,
        in_specs=[
            pl.BlockSpec((F_in, tb), lambda i: (0, i)),   # x tile: lane-dense
            rep(w1), rep(b1),
            rep(w2), rep(b2),
            rep(w3), rep(b3),
        ],
        out_specs=pl.BlockSpec((F_out, tb), lambda i: (0, i)),  # [1, tb]: unmasked stores
        compiler_params=pltpu.CompilerParams(
            dimension_semantics=("parallel",),
            # Headroom for large tiles; ~15 MiB actually used at tb=64K.
            # Stays below v7x's 64 MiB physical VMEM.
            vmem_limit_bytes=48 * 1024 * 1024,
        ),
    )(x_t, w1, b1, w2, b2, w3, b3)

    return jnp.transpose(out_t[:, :B])                    # [B, F_out]


def init_params(key, layer_sizes=(6, 8, 8, 1)):
    """Deterministic init mimicking PyTorch Linear default (U[-1/sqrt(fan_in), +])."""
    params = {}
    for idx in range(1, len(layer_sizes)):
        fan_in, fan_out = layer_sizes[idx - 1], layer_sizes[idx]
        key, kw, kb = jax.random.split(key, 3)
        bound = float(1.0 / (fan_in ** 0.5))
        # Stored in PyTorch layout: weight [out, in], bias [out, 1].
        params[f"w{idx}"] = jax.random.uniform(
            kw, (fan_out, fan_in), jnp.float32, -bound, bound)
        params[f"b{idx}"] = jax.random.uniform(
            kb, (fan_out, 1), jnp.float32, -bound, bound)
    return params


def mlp_reference(x, params):
    h = _elu(x @ params["w1"].T + params["b1"].T)
    h = _elu(h @ params["w2"].T + params["b2"].T)
    return h @ params["w3"].T + params["b3"].T


if __name__ == "__main__":
    key = jax.random.PRNGKey(0)
    kx, kp = jax.random.split(key)

    # Small demo batch of house-feature rows; deliberately NOT a multiple of 128
    # to exercise the cdiv/padding path.  (Production batches should be large
    # so the grid has many tb-row steps.)
    B = 200
    x = jax.random.normal(kx, (B, 6), jnp.float32)
    params = init_params(kp, (6, 8, 8, 1))

    out = jax.block_until_ready(mlp_forward(x, params))

    ref = mlp_reference(x, params)
    assert out.shape == (B, 1)
    assert jnp.allclose(out, ref, atol=1e-5, rtol=1e-5)

    print("KERNEL_OK")
</pallas_src>

<mosaic_0001>
module attributes {stable_mosaic.version = 11 : i64} {
  func.func @mlp_kernel(%arg0: i32, %arg1: memref<6x256xf32, #tpu.memory_space<vmem>>, %arg2: memref<8x6xf32, #tpu.memory_space<vmem>>, %arg3: memref<8x1xf32, #tpu.memory_space<vmem>>, %arg4: memref<8x8xf32, #tpu.memory_space<vmem>>, %arg5: memref<8x1xf32, #tpu.memory_space<vmem>>, %arg6: memref<1x8xf32, #tpu.memory_space<vmem>>, %arg7: memref<1x1xf32, #tpu.memory_space<vmem>>, %arg8: memref<1x256xf32, #tpu.memory_space<vmem>>) attributes {dimension_semantics = [#tpu.dimension_semantics<parallel>], iteration_bounds = array<i64: 1>, scalar_prefetch = 0 : i64, scratch_operands = 0 : i64, tpu.core_type = #tpu.core_type<tc>, window_params = [{transform_indices = @transform_0, window_bounds = array<i64: 6, 256>}, {pipeline_mode = #tpu.pipeline_mode<synchronous>, transform_indices = @transform_1, window_bounds = array<i64: 8, 6>}, {pipeline_mode = #tpu.pipeline_mode<synchronous>, transform_indices = @transform_2, window_bounds = array<i64: 8, 1>}, {pipeline_mode = #tpu.pipeline_mode<synchronous>, transform_indices = @transform_3, window_bounds = array<i64: 8, 8>}, {pipeline_mode = #tpu.pipeline_mode<synchronous>, transform_indices = @transform_4, window_bounds = array<i64: 8, 1>}, {pipeline_mode = #tpu.pipeline_mode<synchronous>, transform_indices = @transform_5, window_bounds = array<i64: 1, 8>}, {pipeline_mode = #tpu.pipeline_mode<synchronous>, transform_indices = @transform_6, window_bounds = array<i64: 1, 1>}, {transform_indices = @transform_7, window_bounds = array<i64: 1, 256>}]} {
    %c0 = arith.constant 0 : index
    %c0_0 = arith.constant 0 : index
    %0 = vector.load %arg1[%c0, %c0_0] : memref<6x256xf32, #tpu.memory_space<vmem>>, vector<6x256xf32>
    %c0_1 = arith.constant 0 : index
    %c0_2 = arith.constant 0 : index
    %1 = vector.load %arg2[%c0_1, %c0_2] : memref<8x6xf32, #tpu.memory_space<vmem>>, vector<8x6xf32>
    %c0_3 = arith.constant 0 : index
    %c0_4 = arith.constant 0 : index
    %2 = vector.load %arg3[%c0_3, %c0_4] : memref<8x1xf32, #tpu.memory_space<vmem>>, vector<8x1xf32>
    %3 = vector.shape_cast %2 : vector<8x1xf32> to vector<8x1xf32>
    %4 = vector.broadcast %3 : vector<8x1xf32> to vector<8x256xf32>
    %5 = vector.extract_strided_slice %1 {offsets = [0, 0], sizes = [8, 1], strides = [1, 1]} : vector<8x6xf32> to vector<8x1xf32>
    %6 = vector.extract_strided_slice %0 {offsets = [0, 0], sizes = [1, 256], strides = [1, 1]} : vector<6x256xf32> to vector<1x256xf32>
    %7 = vector.broadcast %5 : vector<8x1xf32> to vector<8x256xf32>
    %8 = vector.broadcast %6 : vector<1x256xf32> to vector<8x256xf32>
    %9 = arith.mulf %7, %8 : vector<8x256xf32>
    %10 = arith.addf %4, %9 : vector<8x256xf32>
    %11 = vector.extract_strided_slice %1 {offsets = [0, 1], sizes = [8, 1], strides = [1, 1]} : vector<8x6xf32> to vector<8x1xf32>
    %12 = vector.extract_strided_slice %0 {offsets = [1, 0], sizes = [1, 256], strides = [1, 1]} : vector<6x256xf32> to vector<1x256xf32>
    %13 = vector.broadcast %11 : vector<8x1xf32> to vector<8x256xf32>
    %14 = vector.broadcast %12 : vector<1x256xf32> to vector<8x256xf32>
    %15 = arith.mulf %13, %14 : vector<8x256xf32>
    %16 = arith.addf %10, %15 : vector<8x256xf32>
    %17 = vector.extract_strided_slice %1 {offsets = [0, 2], sizes = [8, 1], strides = [1, 1]} : vector<8x6xf32> to vector<8x1xf32>
    %18 = vector.extract_strided_slice %0 {offsets = [2, 0], sizes = [1, 256], strides = [1, 1]} : vector<6x256xf32> to vector<1x256xf32>
    %19 = vector.broadcast %17 : vector<8x1xf32> to vector<8x256xf32>
    %20 = vector.broadcast %18 : vector<1x256xf32> to vector<8x256xf32>
    %21 = arith.mulf %19, %20 : vector<8x256xf32>
    %22 = arith.addf %16, %21 : vector<8x256xf32>
    %23 = vector.extract_strided_slice %1 {offsets = [0, 3], sizes = [8, 1], strides = [1, 1]} : vector<8x6xf32> to vector<8x1xf32>
    %24 = vector.extract_strided_slice %0 {offsets = [3, 0], sizes = [1, 256], strides = [1, 1]} : vector<6x256xf32> to vector<1x256xf32>
    %25 = vector.broadcast %23 : vector<8x1xf32> to vector<8x256xf32>
    %26 = vector.broadcast %24 : vector<1x256xf32> to vector<8x256xf32>
    %27 = arith.mulf %25, %26 : vector<8x256xf32>
    %28 = arith.addf %22, %27 : vector<8x256xf32>
    %29 = vector.extract_strided_slice %1 {offsets = [0, 4], sizes = [8, 1], strides = [1, 1]} : vector<8x6xf32> to vector<8x1xf32>
    %30 = vector.extract_strided_slice %0 {offsets = [4, 0], sizes = [1, 256], strides = [1, 1]} : vector<6x256xf32> to vector<1x256xf32>
    %31 = vector.broadcast %29 : vector<8x1xf32> to vector<8x256xf32>
    %32 = vector.broadcast %30 : vector<1x256xf32> to vector<8x256xf32>
    %33 = arith.mulf %31, %32 : vector<8x256xf32>
    %34 = arith.addf %28, %33 : vector<8x256xf32>
    %35 = vector.extract_strided_slice %1 {offsets = [0, 5], sizes = [8, 1], strides = [1, 1]} : vector<8x6xf32> to vector<8x1xf32>
    %36 = vector.extract_strided_slice %0 {offsets = [5, 0], sizes = [1, 256], strides = [1, 1]} : vector<6x256xf32> to vector<1x256xf32>
    %37 = vector.broadcast %35 : vector<8x1xf32> to vector<8x256xf32>
    %38 = vector.broadcast %36 : vector<1x256xf32> to vector<8x256xf32>
    %39 = arith.mulf %37, %38 : vector<8x256xf32>
    %40 = arith.addf %34, %39 : vector<8x256xf32>
    %cst = arith.constant 0.000000e+00 : f32
    %41 = vector.broadcast %cst : f32 to vector<8x256xf32>
    %42 = arith.cmpf ogt, %40, %41 : vector<8x256xf32>
    %cst_5 = arith.constant 0.000000e+00 : f32
    %43 = vector.broadcast %cst_5 : f32 to vector<8x256xf32>
    %44 = arith.minimumf %40, %43 : vector<8x256xf32>
    %45 = math.exp %44 : vector<8x256xf32>
    %cst_6 = arith.constant 1.000000e+00 : f32
    %46 = vector.broadcast %cst_6 : f32 to vector<8x256xf32>
    %47 = arith.subf %45, %46 : vector<8x256xf32>
    %48 = arith.select %42, %40, %47 : vector<8x256xi1>, vector<8x256xf32>
    %c0_7 = arith.constant 0 : index
    %c0_8 = arith.constant 0 : index
    %49 = vector.load %arg4[%c0_7, %c0_8] : memref<8x8xf32, #tpu.memory_space<vmem>>, vector<8x8xf32>
    %c0_9 = arith.constant 0 : index
    %c0_10 = arith.constant 0 : index
    %50 = vector.load %arg5[%c0_9, %c0_10] : memref<8x1xf32, #tpu.memory_space<vmem>>, vector<8x1xf32>
    %51 = vector.shape_cast %50 : vector<8x1xf32> to vector<8x1xf32>
    %52 = vector.broadcast %51 : vector<8x1xf32> to vector<8x256xf32>
    %53 = vector.extract_strided_slice %49 {offsets = [0, 0], sizes = [8, 1], strides = [1, 1]} : vector<8x8xf32> to vector<8x1xf32>
    %54 = vector.extract_strided_slice %48 {offsets = [0, 0], sizes = [1, 256], strides = [1, 1]} : vector<8x256xf32> to vector<1x256xf32>
    %55 = vector.broadcast %53 : vector<8x1xf32> to vector<8x256xf32>
    %56 = vector.broadcast %54 : vector<1x256xf32> to vector<8x256xf32>
    %57 = arith.mulf %55, %56 : vector<8x256xf32>
    %58 = arith.addf %52, %57 : vector<8x256xf32>
    %59 = vector.extract_strided_slice %49 {offsets = [0, 1], sizes = [8, 1], strides = [1, 1]} : vector<8x8xf32> to vector<8x1xf32>
    %60 = vector.extract_strided_slice %48 {offsets = [1, 0], sizes = [1, 256], strides = [1, 1]} : vector<8x256xf32> to vector<1x256xf32>
    %61 = vector.broadcast %59 : vector<8x1xf32> to vector<8x256xf32>
    %62 = vector.broadcast %60 : vector<1x256xf32> to vector<8x256xf32>
    %63 = arith.mulf %61, %62 : vector<8x256xf32>
    %64 = arith.addf %58, %63 : vector<8x256xf32>
    %65 = vector.extract_strided_slice %49 {offsets = [0, 2], sizes = [8, 1], strides = [1, 1]} : vector<8x8xf32> to vector<8x1xf32>
    %66 = vector.extract_strided_slice %48 {offsets = [2, 0], sizes = [1, 256], strides = [1, 1]} : vector<8x256xf32> to vector<1x256xf32>
    %67 = vector.broadcast %65 : vector<8x1xf32> to vector<8x256xf32>
    %68 = vector.broadcast %66 : vector<1x256xf32> to vector<8x256xf32>
    %69 = arith.mulf %67, %68 : vector<8x256xf32>
    %70 = arith.addf %64, %69 : vector<8x256xf32>
    %71 = vector.extract_strided_slice %49 {offsets = [0, 3], sizes = [8, 1], strides = [1, 1]} : vector<8x8xf32> to vector<8x1xf32>
    %72 = vector.extract_strided_slice %48 {offsets = [3, 0], sizes = [1, 256], strides = [1, 1]} : vector<8x256xf32> to vector<1x256xf32>
    %73 = vector.broadcast %71 : vector<8x1xf32> to vector<8x256xf32>
    %74 = vector.broadcast %72 : vector<1x256xf32> to vector<8x256xf32>
    %75 = arith.mulf %73, %74 : vector<8x256xf32>
    %76 = arith.addf %70, %75 : vector<8x256xf32>
    %77 = vector.extract_strided_slice %49 {offsets = [0, 4], sizes = [8, 1], strides = [1, 1]} : vector<8x8xf32> to vector<8x1xf32>
    %78 = vector.extract_strided_slice %48 {offsets = [4, 0], sizes = [1, 256], strides = [1, 1]} : vector<8x256xf32> to vector<1x256xf32>
    %79 = vector.broadcast %77 : vector<8x1xf32> to vector<8x256xf32>
    %80 = vector.broadcast %78 : vector<1x256xf32> to vector<8x256xf32>
    %81 = arith.mulf %79, %80 : vector<8x256xf32>
    %82 = arith.addf %76, %81 : vector<8x256xf32>
    %83 = vector.extract_strided_slice %49 {offsets = [0, 5], sizes = [8, 1], strides = [1, 1]} : vector<8x8xf32> to vector<8x1xf32>
    %84 = vector.extract_strided_slice %48 {offsets = [5, 0], sizes = [1, 256], strides = [1, 1]} : vector<8x256xf32> to vector<1x256xf32>
    %85 = vector.broadcast %83 : vector<8x1xf32> to vector<8x256xf32>
    %86 = vector.broadcast %84 : vector<1x256xf32> to vector<8x256xf32>
    %87 = arith.mulf %85, %86 : vector<8x256xf32>
    %88 = arith.addf %82, %87 : vector<8x256xf32>
    %89 = vector.extract_strided_slice %49 {offsets = [0, 6], sizes = [8, 1], strides = [1, 1]} : vector<8x8xf32> to vector<8x1xf32>
    %90 = vector.extract_strided_slice %48 {offsets = [6, 0], sizes = [1, 256], strides = [1, 1]} : vector<8x256xf32> to vector<1x256xf32>
    %91 = vector.broadcast %89 : vector<8x1xf32> to vector<8x256xf32>
    %92 = vector.broadcast %90 : vector<1x256xf32> to vector<8x256xf32>
    %93 = arith.mulf %91, %92 : vector<8x256xf32>
    %94 = arith.addf %88, %93 : vector<8x256xf32>
    %95 = vector.extract_strided_slice %49 {offsets = [0, 7], sizes = [8, 1], strides = [1, 1]} : vector<8x8xf32> to vector<8x1xf32>
    %96 = vector.extract_strided_slice %48 {offsets = [7, 0], sizes = [1, 256], strides = [1, 1]} : vector<8x256xf32> to vector<1x256xf32>
    %97 = vector.broadcast %95 : vector<8x1xf32> to vector<8x256xf32>
    %98 = vector.broadcast %96 : vector<1x256xf32> to vector<8x256xf32>
    %99 = arith.mulf %97, %98 : vector<8x256xf32>
    %100 = arith.addf %94, %99 : vector<8x256xf32>
    %cst_11 = arith.constant 0.000000e+00 : f32
    %101 = vector.broadcast %cst_11 : f32 to vector<8x256xf32>
    %102 = arith.cmpf ogt, %100, %101 : vector<8x256xf32>
    %cst_12 = arith.constant 0.000000e+00 : f32
    %103 = vector.broadcast %cst_12 : f32 to vector<8x256xf32>
    %104 = arith.minimumf %100, %103 : vector<8x256xf32>
    %105 = math.exp %104 : vector<8x256xf32>
    %cst_13 = arith.constant 1.000000e+00 : f32
    %106 = vector.broadcast %cst_13 : f32 to vector<8x256xf32>
    %107 = arith.subf %105, %106 : vector<8x256xf32>
    %108 = arith.select %102, %100, %107 : vector<8x256xi1>, vector<8x256xf32>
    %c0_14 = arith.constant 0 : index
    %c0_15 = arith.constant 0 : index
    %109 = vector.load %arg6[%c0_14, %c0_15] : memref<1x8xf32, #tpu.memory_space<vmem>>, vector<1x8xf32>
    %c0_16 = arith.constant 0 : index
    %c0_17 = arith.constant 0 : index
    %110 = vector.load %arg7[%c0_16, %c0_17] : memref<1x1xf32, #tpu.memory_space<vmem>>, vector<1x1xf32>
    %111 = vector.shape_cast %110 : vector<1x1xf32> to vector<1x1xf32>
    %112 = vector.broadcast %111 : vector<1x1xf32> to vector<1x256xf32>
    %113 = vector.extract_strided_slice %109 {offsets = [0, 0], sizes = [1, 1], strides = [1, 1]} : vector<1x8xf32> to vector<1x1xf32>
    %114 = vector.extract_strided_slice %108 {offsets = [0, 0], sizes = [1, 256], strides = [1, 1]} : vector<8x256xf32> to vector<1x256xf32>
    %115 = vector.broadcast %113 : vector<1x1xf32> to vector<1x256xf32>
    %116 = arith.mulf %115, %114 : vector<1x256xf32>
    %117 = arith.addf %112, %116 : vector<1x256xf32>
    %118 = vector.extract_strided_slice %109 {offsets = [0, 1], sizes = [1, 1], strides = [1, 1]} : vector<1x8xf32> to vector<1x1xf32>
    %119 = vector.extract_strided_slice %108 {offsets = [1, 0], sizes = [1, 256], strides = [1, 1]} : vector<8x256xf32> to vector<1x256xf32>
    %120 = vector.broadcast %118 : vector<1x1xf32> to vector<1x256xf32>
    %121 = arith.mulf %120, %119 : vector<1x256xf32>
    %122 = arith.addf %117, %121 : vector<1x256xf32>
    %123 = vector.extract_strided_slice %109 {offsets = [0, 2], sizes = [1, 1], strides = [1, 1]} : vector<1x8xf32> to vector<1x1xf32>
    %124 = vector.extract_strided_slice %108 {offsets = [2, 0], sizes = [1, 256], strides = [1, 1]} : vector<8x256xf32> to vector<1x256xf32>
    %125 = vector.broadcast %123 : vector<1x1xf32> to vector<1x256xf32>
    %126 = arith.mulf %125, %124 : vector<1x256xf32>
    %127 = arith.addf %122, %126 : vector<1x256xf32>
    %128 = vector.extract_strided_slice %109 {offsets = [0, 3], sizes = [1, 1], strides = [1, 1]} : vector<1x8xf32> to vector<1x1xf32>
    %129 = vector.extract_strided_slice %108 {offsets = [3, 0], sizes = [1, 256], strides = [1, 1]} : vector<8x256xf32> to vector<1x256xf32>
    %130 = vector.broadcast %128 : vector<1x1xf32> to vector<1x256xf32>
    %131 = arith.mulf %130, %129 : vector<1x256xf32>
    %132 = arith.addf %127, %131 : vector<1x256xf32>
    %133 = vector.extract_strided_slice %109 {offsets = [0, 4], sizes = [1, 1], strides = [1, 1]} : vector<1x8xf32> to vector<1x1xf32>
    %134 = vector.extract_strided_slice %108 {offsets = [4, 0], sizes = [1, 256], strides = [1, 1]} : vector<8x256xf32> to vector<1x256xf32>
    %135 = vector.broadcast %133 : vector<1x1xf32> to vector<1x256xf32>
    %136 = arith.mulf %135, %134 : vector<1x256xf32>
    %137 = arith.addf %132, %136 : vector<1x256xf32>
    %138 = vector.extract_strided_slice %109 {offsets = [0, 5], sizes = [1, 1], strides = [1, 1]} : vector<1x8xf32> to vector<1x1xf32>
    %139 = vector.extract_strided_slice %108 {offsets = [5, 0], sizes = [1, 256], strides = [1, 1]} : vector<8x256xf32> to vector<1x256xf32>
    %140 = vector.broadcast %138 : vector<1x1xf32> to vector<1x256xf32>
    %141 = arith.mulf %140, %139 : vector<1x256xf32>
    %142 = arith.addf %137, %141 : vector<1x256xf32>
    %143 = vector.extract_strided_slice %109 {offsets = [0, 6], sizes = [1, 1], strides = [1, 1]} : vector<1x8xf32> to vector<1x1xf32>
    %144 = vector.extract_strided_slice %108 {offsets = [6, 0], sizes = [1, 256], strides = [1, 1]} : vector<8x256xf32> to vector<1x256xf32>
    %145 = vector.broadcast %143 : vector<1x1xf32> to vector<1x256xf32>
    %146 = arith.mulf %145, %144 : vector<1x256xf32>
    %147 = arith.addf %142, %146 : vector<1x256xf32>
    %148 = vector.extract_strided_slice %109 {offsets = [0, 7], sizes = [1, 1], strides = [1, 1]} : vector<1x8xf32> to vector<1x1xf32>
    %149 = vector.extract_strided_slice %108 {offsets = [7, 0], sizes = [1, 256], strides = [1, 1]} : vector<8x256xf32> to vector<1x256xf32>
    %150 = vector.broadcast %148 : vector<1x1xf32> to vector<1x256xf32>
    %151 = arith.mulf %150, %149 : vector<1x256xf32>
    %152 = arith.addf %147, %151 : vector<1x256xf32>
    %c0_18 = arith.constant 0 : index
    %c0_19 = arith.constant 0 : index
    %153 = vector.load %arg8[%c0_18, %c0_19] : memref<1x256xf32, #tpu.memory_space<vmem>>, vector<1x256xf32>
    tpu.vector_store %arg8[%c0_18, %c0_19], %152 {strides = array<i32>} : memref<1x256xf32, #tpu.memory_space<vmem>>, vector<1x256xf32>,
    return
  }
  func.func @transform_0(%arg0: i32) -> (i32, i32) {
    %c0_i32 = arith.constant 0 : i32
    %c0_i32_0 = arith.constant 0 : i32
    return %c0_i32, %arg0 : i32, i32
  }
  func.func @transform_1(%arg0: i32) -> (i32, i32) {
    %c0_i32 = arith.constant 0 : i32
    %c0_i32_0 = arith.constant 0 : i32
    %c0_i32_1 = arith.constant 0 : i32
    return %c0_i32, %c0_i32_0 : i32, i32
  }
  func.func @transform_2(%arg0: i32) -> (i32, i32) {
    %c0_i32 = arith.constant 0 : i32
    %c0_i32_0 = arith.constant 0 : i32
    %c0_i32_1 = arith.constant 0 : i32
    return %c0_i32, %c0_i32_0 : i32, i32
  }
  func.func @transform_3(%arg0: i32) -> (i32, i32) {
    %c0_i32 = arith.constant 0 : i32
    %c0_i32_0 = arith.constant 0 : i32
    %c0_i32_1 = arith.constant 0 : i32
    return %c0_i32, %c0_i32_0 : i32, i32
  }
  func.func @transform_4(%arg0: i32) -> (i32, i32) {
    %c0_i32 = arith.constant 0 : i32
    %c0_i32_0 = arith.constant 0 : i32
    %c0_i32_1 = arith.constant 0 : i32
    return %c0_i32, %c0_i32_0 : i32, i32
  }
  func.func @transform_5(%arg0: i32) -> (i32, i32) {
    %c0_i32 = arith.constant 0 : i32
    %c0_i32_0 = arith.constant 0 : i32
    %c0_i32_1 = arith.constant 0 : i32
    return %c0_i32, %c0_i32_0 : i32, i32
  }
  func.func @transform_6(%arg0: i32) -> (i32, i32) {
    %c0_i32 = arith.constant 0 : i32
    %c0_i32_0 = arith.constant 0 : i32
    %c0_i32_1 = arith.constant 0 : i32
    return %c0_i32, %c0_i32_0 : i32, i32
  }
  func.func @transform_7(%arg0: i32) -> (i32, i32) {
    %c0_i32 = arith.constant 0 : i32
    %c0_i32_0 = arith.constant 0 : i32
    return %c0_i32, %arg0 : i32, i32
  }
}

</mosaic_0001>

<llo_original>
// kernel: tpu_custom_call.1
$region0: #{tpu_custom_call.1}
  #allocation0 [shape = 'u32[]', space=smem, size = 0x4, offset = 0x4, fixed_abs, tag = 'smem constant byte address 0x4 - core index']
  #allocation1 [shape = 'u32[144,128]{1,0:T(1,128)}', space=vmem, size = 0x12000, scoped, tag = 'internal scratch']
  #allocation2 [shape = 'f32[1,1]{1,0:T(1,128)S(1)}', space=vmem, size = 0x200, scoped, tag = 'scoped memory for tpu_custom_call.1']
  %s0 = inlined_call_operand.vmem [shape: f32[6,256], index: 0, kind: input, shape index: {}]
  %s1 = inlined_call_operand.hbm [shape: f32[8,6], index: 1, kind: input, shape index: {}]
  %s2 = inlined_call_operand.vmem [shape: f32[8,1], index: 2, kind: input, shape index: {}]
  %s3 = inlined_call_operand.vmem [shape: f32[8,8], index: 3, kind: input, shape index: {}]
  %s4 = inlined_call_operand.vmem [shape: f32[8,1], index: 4, kind: input, shape index: {}]
  %s5 = inlined_call_operand.vmem [shape: f32[1,8], index: 5, kind: input, shape index: {}]
  %s6 = inlined_call_operand.<no memory space> [shape: f32[1,1], index: 6, kind: input, shape index: {}]
  %s7 = inlined_call_operand.hbm [shape: f32[1,256], index: 7, kind: output, shape index: {}]
  %s8 = sld [smem:[#allocation0]]
  $region42: #{tpu_custom_call.1} parent=0
    _
  %s10 = ssub.s32 1, %s8
  %s11 = scalar_select 0, %s10, %s8
  %v12 = vstv %s6
  %13 = vst [vmem:[#allocation2] sm:$0x1] %v12
  $region1: #{tpu_custom_call.1} parent=0
    #allocation3 [shape = 'u8[4096]{0}', space=vmem, size = 0x1000, scoped, tag = 'input window, operand 1, single buffered']
    #allocation4 [shape = 's32[1]{0}', space=sflag, size = 0x4, scoped, tag = 'scoped memory for tpu_custom_call.1']
    #allocation5 [shape = 's32[1]{0}', space=sflag, size = 0x4, scoped, tag = 'scoped memory for tpu_custom_call.1']
    #allocation6 [shape = 'u8[1024]{0}', space=vmem, size = 0x400, scoped, tag = 'output window, operand 0, single buffered']
    %14 = vsyncpa [#allocation4], 0
    %15 = vsyncpa [#allocation5], 0
    // Predicated region
    $region2: #{tpu_custom_call.1} parent=1 // pred_check
      _
    $region3: #{tpu_custom_call.1} parent=1 // pred_check_branch
      %17 = sbr.rel (0) target = $region5
    $region4: #{tpu_custom_call.1} parent=1 // pred_region
      _
    $region5: #{tpu_custom_call.1} parent=1 // pred_fallthru
      _
    // Predicated region
    $region6: #{tpu_custom_call.1} parent=1 // pred_check
      _
    $region7: #{tpu_custom_call.1} parent=1 // pred_check_branch
      %19 = sbr.rel (0) target = $region9
    $region8: #{tpu_custom_call.1} parent=1 // pred_region
      %s21 = ssub.s32 128, 128
      %22 = vsyncadd [#allocation4], %s21
      %s24 = sshll.u32 [#allocation3], 4
      %s25 = int_to_ptr.vmem [resolvable:$true] %s24
      %27 = dma.hbm_to_vmem [thread:$0]  %s1, 128, %s25, [#allocation4]
    $region9: #{tpu_custom_call.1} parent=1 // pred_fallthru
      _
    // Predicated region
    $region10: #{tpu_custom_call.1} parent=1 // pred_check
      _
    $region11: #{tpu_custom_call.1} parent=1 // pred_check_branch
      %29 = sbr.rel (0) target = $region13
    $region12: #{tpu_custom_call.1} parent=1 // pred_region
      _
    $region13: #{tpu_custom_call.1} parent=1 // pred_fallthru
      _
    // Predicated region
    $region14: #{tpu_custom_call.1} parent=1 // pred_check
      _
    $region15: #{tpu_custom_call.1} parent=1 // pred_check_branch
      %31 = sbr.rel (0) target = $region17
    $region16: #{tpu_custom_call.1} parent=1 // pred_region
      _
    $region17: #{tpu_custom_call.1} parent=1 // pred_fallthru
      _
    // Predicated region
    $region18: #{tpu_custom_call.1} parent=1 // pred_check
      _
    $region19: #{tpu_custom_call.1} parent=1 // pred_check_branch
      %33 = sbr.rel (0) target = $region21
    $region20: #{tpu_custom_call.1} parent=1 // pred_region
      _
    $region21: #{tpu_custom_call.1} parent=1 // pred_fallthru
      _
    // Predicated region
    $region22: #{tpu_custom_call.1} parent=1 // pred_check
      _
    $region23: #{tpu_custom_call.1} parent=1 // pred_check_branch
      %35 = sbr.rel (0) target = $region25
    $region24: #{tpu_custom_call.1} parent=1 // pred_region
      _
    $region25: #{tpu_custom_call.1} parent=1 // pred_fallthru
      _
    // Predicated region
    $region26: #{tpu_custom_call.1} parent=1 // pred_check
      _
    $region27: #{tpu_custom_call.1} parent=1 // pred_check_branch
      %37 = sbr.rel (0) target = $region29
    $region28: #{tpu_custom_call.1} parent=1 // pred_region
      _
    $region29: #{tpu_custom_call.1} parent=1 // pred_fallthru
      _
    // Predicated region
    $region30: #{tpu_custom_call.1} parent=1 // pred_check
      _
    $region31: #{tpu_custom_call.1} parent=1 // pred_check_branch
      %39 = sbr.rel (0) target = $region33
    $region32: #{tpu_custom_call.1} parent=1 // pred_region
      %40 = dma.done [#allocation4], 128
    $region33: #{tpu_custom_call.1} parent=1 // pred_fallthru
      _
    %v41 = vld [vmem:[%s0] sm:$0x3f]
    %v42 = vld [vmem:[%s0 + $0x8] sm:$0x3f]
    %v43 = vld [vmem:[#allocation3] sm:$0xff]
    %v44 = vld [vmem:[%s2] sm:$0xff]
    %46 = vset.pattern.permute.xlu0 0
    %47 = vperm.xlu0 %46, %v44
    %v48 = vpop.permute.xlu0 %47
    %51 = vset.pattern.permute.xlu0 0
    %52 = vperm.xlu0 %51, %v43
    %v53 = vpop.permute.xlu0 %52
    %v55 = vlaneseq
    %v56 = vshrl.u32 %v55, 7
    %v57 = vsub.s32 0, %v56
    %v58 = vrot.slane %v41, %v57
    %v59 = vlaneseq
    %v60 = vshrl.u32 %v59, 7
    %v61 = vsub.s32 0, %v60
    %v62 = vrot.slane %v42, %v61
    %v63 = vmul.f32 %v53, %v58
    %v64 = vmul.f32 %v53, %v62
    %v65 = vadd.f32 %v48, %v63
    %v66 = vadd.f32 %v48, %v64
    %67 = vset.pattern.permute.xlu0 1
    %68 = vperm.xlu0 %67, %v43
    %v69 = vpop.permute.xlu0 %68
    %v71 = vlaneseq
    %v72 = vshrl.u32 %v71, 7
    %v73 = vsub.s32 1, %v72
    %v74 = vrot.slane %v41, %v73
    %v75 = vlaneseq
    %v76 = vshrl.u32 %v75, 7
    %v77 = vsub.s32 1, %v76
    %v78 = vrot.slane %v42, %v77
    %v79 = vmul.f32 %v69, %v74
    %v80 = vmul.f32 %v69, %v78
    %v81 = vadd.f32 %v65, %v79
    %v82 = vadd.f32 %v66, %v80
    %83 = vset.pattern.permute.xlu0 2
    %84 = vperm.xlu0 %83, %v43
    %v85 = vpop.permute.xlu0 %84
    %v87 = vlaneseq
    %v88 = vshrl.u32 %v87, 7
    %v89 = vsub.s32 2, %v88
    %v90 = vrot.slane %v41, %v89
    %v91 = vlaneseq
    %v92 = vshrl.u32 %v91, 7
    %v93 = vsub.s32 2, %v92
    %v94 = vrot.slane %v42, %v93
    %v95 = vmul.f32 %v85, %v90
    %v96 = vmul.f32 %v85, %v94
    %v97 = vadd.f32 %v81, %v95
    %v98 = vadd.f32 %v82, %v96
    %99 = vset.pattern.permute.xlu0 3
    %100 = vperm.xlu0 %99, %v43
    %v101 = vpop.permute.xlu0 %100
    %v103 = vlaneseq
    %v104 = vshrl.u32 %v103, 7
    %v105 = vsub.s32 3, %v104
    %v106 = vrot.slane %v41, %v105
    %v107 = vlaneseq
    %v108 = vshrl.u32 %v107, 7
    %v109 = vsub.s32 3, %v108
    %v110 = vrot.slane %v42, %v109
    %v111 = vmul.f32 %v101, %v106
    %v112 = vmul.f32 %v101, %v110
    %v113 = vadd.f32 %v97, %v111
    %v114 = vadd.f32 %v98, %v112
    %115 = vset.pattern.permute.xlu0 4
    %116 = vperm.xlu0 %115, %v43
    %v117 = vpop.permute.xlu0 %116
    %v119 = vlaneseq
    %v120 = vshrl.u32 %v119, 7
    %v121 = vsub.s32 4, %v120
    %v122 = vrot.slane %v41, %v121
    %v123 = vlaneseq
    %v124 = vshrl.u32 %v123, 7
    %v125 = vsub.s32 4, %v124
    %v126 = vrot.slane %v42, %v125
    %v127 = vmul.f32 %v117, %v122
    %v128 = vmul.f32 %v117, %v126
    %v129 = vadd.f32 %v113, %v127
    %v130 = vadd.f32 %v114, %v128
    %131 = vset.pattern.permute.xlu0 5
    %132 = vperm.xlu0 %131, %v43
    %v133 = vpop.permute.xlu0 %132
    %v135 = vlaneseq
    %v136 = vshrl.u32 %v135, 7
    %v137 = vsub.s32 5, %v136
    %v138 = vrot.slane %v41, %v137
    %v139 = vlaneseq
    %v140 = vshrl.u32 %v139, 7
    %v141 = vsub.s32 5, %v140
    %v142 = vrot.slane %v42, %v141
    %v143 = vmul.f32 %v133, %v138
    %v144 = vmul.f32 %v133, %v142
    %v145 = vadd.f32 %v129, %v143
    %v146 = vadd.f32 %v130, %v144
    %vm147 = vcmp.gt.f32.partialorder %v145, 0.0
    %vm148 = vcmp.gt.f32.partialorder %v146, 0.0
    %v149 = vmin.f32 %v145, 0.0
    %v150 = vmin.f32 %v146, 0.0
    %v151 = vmul.f32 %v149, 1.442695
    %v152 = vpow.pop %v151
    %v153 = vmul.f32 %v150, 1.442695
    %v154 = vpow.pop %v153
    %v155 = vsub.f32 %v152, 1.0
    %v156 = vsub.f32 %v154, 1.0
    %v157 = vsel %vm147, %v145, %v155
    %v158 = vsel %vm148, %v146, %v156
    %v159 = vld [vmem:[%s3] sm:$0xff]
    %v160 = vld [vmem:[%s4] sm:$0xff]
    %162 = vset.pattern.permute.xlu0 0
    %163 = vperm.xlu0 %162, %v160
    %v164 = vpop.permute.xlu0 %163
    %167 = vset.pattern.permute.xlu0 0
    %168 = vperm.xlu0 %167, %v159
    %v169 = vpop.permute.xlu0 %168
    %v171 = vlaneseq
    %v172 = vshrl.u32 %v171, 7
    %v173 = vsub.s32 0, %v172
    %v174 = vrot.slane %v157, %v173
    %v175 = vlaneseq
    %v176 = vshrl.u32 %v175, 7
    %v177 = vsub.s32 0, %v176
    %v178 = vrot.slane %v158, %v177
    %v179 = vmul.f32 %v169, %v174
    %v180 = vmul.f32 %v169, %v178
    %v181 = vadd.f32 %v164, %v179
    %v182 = vadd.f32 %v164, %v180
    %183 = vset.pattern.permute.xlu0 1
    %184 = vperm.xlu0 %183, %v159
    %v185 = vpop.permute.xlu0 %184
    %v187 = vlaneseq
    %v188 = vshrl.u32 %v187, 7
    %v189 = vsub.s32 1, %v188
    %v190 = vrot.slane %v157, %v189
    %v191 = vlaneseq
    %v192 = vshrl.u32 %v191, 7
    %v193 = vsub.s32 1, %v192
    %v194 = vrot.slane %v158, %v193
    %v195 = vmul.f32 %v185, %v190
    %v196 = vmul.f32 %v185, %v194
    %v197 = vadd.f32 %v181, %v195
    %v198 = vadd.f32 %v182, %v196
    %199 = vset.pattern.permute.xlu0 2
    %200 = vperm.xlu0 %199, %v159
    %v201 = vpop.permute.xlu0 %200
    %v203 = vlaneseq
    %v204 = vshrl.u32 %v203, 7
    %v205 = vsub.s32 2, %v204
    %v206 = vrot.slane %v157, %v205
    %v207 = vlaneseq
    %v208 = vshrl.u32 %v207, 7
    %v209 = vsub.s32 2, %v208
    %v210 = vrot.slane %v158, %v209
    %v211 = vmul.f32 %v201, %v206
    %v212 = vmul.f32 %v201, %v210
    %v213 = vadd.f32 %v197, %v211
    %v214 = vadd.f32 %v198, %v212
    %215 = vset.pattern.permute.xlu0 3
    %216 = vperm.xlu0 %215, %v159
    %v217 = vpop.permute.xlu0 %216
    %v219 = vlaneseq
    %v220 = vshrl.u32 %v219, 7
    %v221 = vsub.s32 3, %v220
    %v222 = vrot.slane %v157, %v221
    %v223 = vlaneseq
    %v224 = vshrl.u32 %v223, 7
    %v225 = vsub.s32 3, %v224
    %v226 = vrot.slane %v158, %v225
    %v227 = vmul.f32 %v217, %v222
    %v228 = vmul.f32 %v217, %v226
    %v229 = vadd.f32 %v213, %v227
    %v230 = vadd.f32 %v214, %v228
    %231 = vset.pattern.permute.xlu0 4
    %232 = vperm.xlu0 %231, %v159
    %v233 = vpop.permute.xlu0 %232
    %v235 = vlaneseq
    %v236 = vshrl.u32 %v235, 7
    %v237 = vsub.s32 4, %v236
    %v238 = vrot.slane %v157, %v237
    %v239 = vlaneseq
    %v240 = vshrl.u32 %v239, 7
    %v241 = vsub.s32 4, %v240
    %v242 = vrot.slane %v158, %v241
    %v243 = vmul.f32 %v233, %v238
    %v244 = vmul.f32 %v233, %v242
    %v245 = vadd.f32 %v229, %v243
    %v246 = vadd.f32 %v230, %v244
    %247 = vset.pattern.permute.xlu0 5
    %248 = vperm.xlu0 %247, %v159
    %v249 = vpop.permute.xlu0 %248
    %v251 = vlaneseq
    %v252 = vshrl.u32 %v251, 7
    %v253 = vsub.s32 5, %v252
    %v254 = vrot.slane %v157, %v253
    %v255 = vlaneseq
    %v256 = vshrl.u32 %v255, 7
    %v257 = vsub.s32 5, %v256
    %v258 = vrot.slane %v158, %v257
    %v259 = vmul.f32 %v249, %v254
    %v260 = vmul.f32 %v249, %v258
    %v261 = vadd.f32 %v245, %v259
    %v262 = vadd.f32 %v246, %v260
    %263 = vset.pattern.permute.xlu0 6
    %264 = vperm.xlu0 %263, %v159
    %v265 = vpop.permute.xlu0 %264
    %v267 = vlaneseq
    %v268 = vshrl.u32 %v267, 7
    %v269 = vsub.s32 6, %v268
    %v270 = vrot.slane %v157, %v269
    %v271 = vlaneseq
    %v272 = vshrl.u32 %v271, 7
    %v273 = vsub.s32 6, %v272
    %v274 = vrot.slane %v158, %v273
    %v275 = vmul.f32 %v265, %v270
    %v276 = vmul.f32 %v265, %v274
    %v277 = vadd.f32 %v261, %v275
    %v278 = vadd.f32 %v262, %v276
    %279 = vset.pattern.permute.xlu0 7
    %280 = vperm.xlu0 %279, %v159
    %v281 = vpop.permute.xlu0 %280
    %v283 = vlaneseq
    %v284 = vshrl.u32 %v283, 7
    %v285 = vsub.s32 7, %v284
    %v286 = vrot.slane %v157, %v285
    %v287 = vlaneseq
    %v288 = vshrl.u32 %v287, 7
    %v289 = vsub.s32 7, %v288
    %v290 = vrot.slane %v158, %v289
    %v291 = vmul.f32 %v281, %v286
    %v292 = vmul.f32 %v281, %v290
    %v293 = vadd.f32 %v277, %v291
    %v294 = vadd.f32 %v278, %v292
    %vm295 = vcmp.gt.f32.partialorder %v293, 0.0
    %vm296 = vcmp.gt.f32.partialorder %v294, 0.0
    %v297 = vmin.f32 %v293, 0.0
    %v298 = vmin.f32 %v294, 0.0
    %v299 = vmul.f32 %v297, 1.442695
    %v300 = vpow.pop %v299
    %v301 = vmul.f32 %v298, 1.442695
    %v302 = vpow.pop %v301
    %v303 = vsub.f32 %v300, 1.0
    %v304 = vsub.f32 %v302, 1.0
    %v305 = vsel %vm295, %v293, %v303
    %v306 = vsel %vm296, %v294, %v304
    %v307 = vld [vmem:[%s5] sm:$0x1]
    %v308 = vld [vmem:[#allocation2] sm:$0x1]
    %310 = vset.pattern.permute.xlu0 0
    %311 = vperm.xlu0 %310, %v308
    %v312 = vpop.permute.xlu0 %311
    %v314 = vlaneseq
    %v315 = vshrl.u32 %v314, 7
    %v316 = vsub.s32 0, %v315
    %v317 = vrot.slane %v312, %v316
    %319 = vset.pattern.permute.xlu0 0
    %320 = vperm.xlu0 %319, %v307
    %v321 = vpop.permute.xlu0 %320
    %v323 = vlaneseq
    %v324 = vshrl.u32 %v323, 7
    %v325 = vsub.s32 0, %v324
    %v326 = vrot.slane %v321, %v325
    %v327 = vmul.f32 %v326, %v305
    %v328 = vmul.f32 %v326, %v306
    %v329 = vadd.f32 %v317, %v327
    %v330 = vadd.f32 %v317, %v328
    %331 = vset.pattern.permute.xlu0 1
    %332 = vperm.xlu0 %331, %v307
    %v333 = vpop.permute.xlu0 %332
    %v335 = vlaneseq
    %v336 = vshrl.u32 %v335, 7
    %v337 = vsub.s32 0, %v336
    %v338 = vrot.slane %v333, %v337
    %v339 = vmul.f32 %v338, %v305
    %v340 = vmul.f32 %v338, %v306
    %v343 = vrot.slane %v339, 1
    %v344 = vrot.slane %v340, 1
    %v347 = vadd.f32 %v329, %v343
    %v348 = vadd.f32 %v330, %v344
    %349 = vset.pattern.permute.xlu0 2
    %350 = vperm.xlu0 %349, %v307
    %v351 = vpop.permute.xlu0 %350
    %v353 = vlaneseq
    %v354 = vshrl.u32 %v353, 7
    %v355 = vsub.s32 0, %v354
    %v356 = vrot.slane %v351, %v355
    %v357 = vmul.f32 %v356, %v305
    %v358 = vmul.f32 %v356, %v306
    %v361 = vrot.slane %v357, 2
    %v362 = vrot.slane %v358, 2
    %v365 = vadd.f32 %v347, %v361
    %v366 = vadd.f32 %v348, %v362
    %367 = vset.pattern.permute.xlu0 3
    %368 = vperm.xlu0 %367, %v307
    %v369 = vpop.permute.xlu0 %368
    %v371 = vlaneseq
    %v372 = vshrl.u32 %v371, 7
    %v373 = vsub.s32 0, %v372
    %v374 = vrot.slane %v369, %v373
    %v375 = vmul.f32 %v374, %v305
    %v376 = vmul.f32 %v374, %v306
    %v379 = vrot.slane %v375, 3
    %v380 = vrot.slane %v376, 3
    %v383 = vadd.f32 %v365, %v379
    %v384 = vadd.f32 %v366, %v380
    %385 = vset.pattern.permute.xlu0 4
    %386 = vperm.xlu0 %385, %v307
    %v387 = vpop.permute.xlu0 %386
    %v389 = vlaneseq
    %v390 = vshrl.u32 %v389, 7
    %v391 = vsub.s32 0, %v390
    %v392 = vrot.slane %v387, %v391
    %v393 = vmul.f32 %v392, %v305
    %v394 = vmul.f32 %v392, %v306
    %v397 = vrot.slane %v393, 4
    %v398 = vrot.slane %v394, 4
    %v401 = vadd.f32 %v383, %v397
    %v402 = vadd.f32 %v384, %v398
    %403 = vset.pattern.permute.xlu0 5
    %404 = vperm.xlu0 %403, %v307
    %v405 = vpop.permute.xlu0 %404
    %v407 = vlaneseq
    %v408 = vshrl.u32 %v407, 7
    %v409 = vsub.s32 0, %v408
    %v410 = vrot.slane %v405, %v409
    %v411 = vmul.f32 %v410, %v305
    %v412 = vmul.f32 %v410, %v306
    %v415 = vrot.slane %v411, 5
    %v416 = vrot.slane %v412, 5
    %v419 = vadd.f32 %v401, %v415
    %v420 = vadd.f32 %v402, %v416
    %421 = vset.pattern.permute.xlu0 6
    %422 = vperm.xlu0 %421, %v307
    %v423 = vpop.permute.xlu0 %422
    %v425 = vlaneseq
    %v426 = vshrl.u32 %v425, 7
    %v427 = vsub.s32 0, %v426
    %v428 = vrot.slane %v423, %v427
    %v429 = vmul.f32 %v428, %v305
    %v430 = vmul.f32 %v428, %v306
    %v433 = vrot.slane %v429, 6
    %v434 = vrot.slane %v430, 6
    %v437 = vadd.f32 %v419, %v433
    %v438 = vadd.f32 %v420, %v434
    %439 = vset.pattern.permute.xlu0 7
    %440 = vperm.xlu0 %439, %v307
    %v441 = vpop.permute.xlu0 %440
    %v443 = vlaneseq
    %v444 = vshrl.u32 %v443, 7
    %v445 = vsub.s32 0, %v444
    %v446 = vrot.slane %v441, %v445
    %v447 = vmul.f32 %v446, %v305
    %v448 = vmul.f32 %v446, %v306
    %v451 = vrot.slane %v447, 7
    %v452 = vrot.slane %v448, 7
    %v455 = vadd.f32 %v437, %v451
    %v456 = vadd.f32 %v438, %v452
    %v459 = vcombine.low %v455, %v456
    %v461 = vunpack.c.l.s4 1966171168
    %v462 = vunpack.c.0.s8 %v461
    %v463 = vlaneseq
    %v464 = vshrl.u32 %v463, 7
    %v465 = vsub.s32 %v462, %v464
    %v466 = vrot.slane %v459, %v465
    %v468 = vunpack.c.l.s4 1966171168
    %v469 = vunpack.c.0.s8 %v468
    %v470 = vlaneseq
    %v471 = vshrl.u32 %v470, 7
    %v472 = vsub.s32 %v469, %v471
    %v473 = vrot.slane %v466, %v472
    %v475 = vlaneseq
    %vm476 = vcmp.ge.s32.totalorder %v475, 0
    %vm477 = vcmp.lt.s32.totalorder %v475, 256
    %vm478 = vmand %vm476, %vm477
    %479 = vst.msk [vmem:[#allocation6] sm:$0x3] %vm478, %v473
    // Predicated region
    $region34: #{tpu_custom_call.1} parent=1 // pred_check
      _
    $region35: #{tpu_custom_call.1} parent=1 // pred_check_branch
      %481 = sbr.rel (0) target = $region37
    $region36: #{tpu_custom_call.1} parent=1 // pred_region
      %s483 = ssub.s32 32, 32
      %484 = vsyncadd [#allocation5], %s483
      %s486 = sshll.u32 [#allocation6], 4
      %s487 = int_to_ptr.vmem [resolvable:$true] %s486
      %489 = dma.vmem_to_hbm [thread:$0]  %s487, 32, %s7, [#allocation5]
    $region37: #{tpu_custom_call.1} parent=1 // pred_fallthru
      _
    // Predicated region
    $region38: #{tpu_custom_call.1} parent=1 // pred_check
      _
    $region39: #{tpu_custom_call.1} parent=1 // pred_check_branch
      %491 = sbr.rel (0) target = $region41
    $region40: #{tpu_custom_call.1} parent=1 // pred_region
      %492 = dma.done [#allocation5], 32
    $region41: #{tpu_custom_call.1} parent=1 // pred_fallthru
      _
    %493 = vsyncpa [#allocation4], 1
    %494 = vsyncpa [#allocation5], 1

</llo_original>
